<compile_context>
chip_gen: v6e
topology: v6e:2x2x1
jax: 0.10.0
libtpu: 0.0.40
codegen_flags: <defaults>
</compile_context>

<pallas_src>
import jax
import jax.numpy as jnp
from jax.experimental import pallas as pl
from jax.experimental.pallas import tpu as pltpu


def _make_svmogp_kernel(QMp, use_bf16):
    def kernel(x_ref, y_ref, c1_ref, z_ref, nl_ref, scale_ref, ik_ref, sq_ref,
               out_ref, acc_ref):
        t = pl.program_id(2)

        @pl.when(t == 0)
        def _():
            acc_ref[...] = jnp.zeros_like(acc_ref)

        x = x_ref[...]                               # (1, TN)  lane-dense data points
        diff = x - z_ref[...]                        # (QMp, TN)
        expo = nl_ref[...] * (diff * diff)           # -(x - z)^2 / (2 ls^2)

        if use_bf16:
            # TODO(synk): bf16 exp / bf16 MXU RHS path (v6e/v7x only); keep the
            # variance product/accumulate in f32 and re-validate vs the f32 reference.
            kfu_mx = (scale_ref[...].astype(jnp.bfloat16)
                      * jnp.exp(expo.astype(jnp.bfloat16)))
            kfu = kfu_mx.astype(jnp.float32)
        else:
            kfu = scale_ref[...] * jnp.exp(expo)     # LMC-scaled cross-cov (QMp, TN)
            kfu_mx = kfu

        # A = iKuu_blk @ Kfu  (interpolation weights).  Doing iKuu *first* keeps the
        # variance quadratic form well conditioned (same ordering as the reference).
        a = jnp.dot(ik_ref[...], kfu_mx, preferred_element_type=jnp.float32)
        # One augmented matmul: rows [0, QMp) give qS_blk @ A (variance term), row QMp
        # is the stacked q_m row and yields the posterior mean directly.
        g = jnp.dot(sq_ref[...], a, preferred_element_type=jnp.float32)

        m_f = g[QMp:QMp + 1, :]                                        # (1, TN)
        vq = jnp.sum(a * (g[:QMp, :] - kfu), axis=0, keepdims=True)    # (1, TN)

        r = y_ref[...] - m_f
        # c1 = 0.5*rate/sig2, already zeroed on padded columns (mask folded in glue).
        acc_ref[...] += c1_ref[...] * (r * r + vq)

        @pl.when(t == pl.num_programs(2) - 1)
        def _():
            out_ref[...] = jnp.sum(acc_ref[...], axis=1, keepdims=True)

    return kernel


def svmogp_forward(x, y, params, *, tile_n=4096, n_splits=1, use_bf16_kfu=False):
    """Returns the negative ELBO (scalar), matching SVMOGP.forward semantics
    (Gaussian likelihoods, LMC coregionalization)."""
    f32 = jnp.float32
    z = params["z"].astype(f32)                 # (Q, M)
    q_m = params["q_m"].astype(f32)             # (M, Q)
    q_L = params["q_L"].astype(f32)             # (Q, M, M)
    W = params["W"].astype(f32)                 # (D, Q)   LMC mixing weights
    ls = params["lengthscales"].astype(f32)     # (Q,)
    var = params["variances"].astype(f32)       # (Q,)
    sig2 = params["noise_var"].astype(f32)      # (D,)
    rates = params["batch_rates"].astype(f32)   # (D,)

    D, N, _ = x.shape
    Q, M = z.shape
    QM = Q * M
    QMp = ((QM + 7) // 8) * 8                   # sublane-aligned stacked row count
    R = QMp + 8                                 # augmented LHS rows (mean row at QMp)

    # ---- d-independent M x M linear algebra -------------------------------------
    # TODO(synk): solve / slogdet (Kuu inverse, log-dets) and the KL term have no
    # Pallas TPU equivalent; they stay in plain JAX glue (tiny, data-size independent).
    eye = jnp.eye(M, dtype=f32)
    jitter = 1e-5

    def per_q(zq, lsq, varq, qLq, qmq):
        d2 = (zq[:, None] - zq[None, :]) ** 2
        Kuu = varq * jnp.exp(-0.5 * d2 / (lsq * lsq)) + jitter * eye
        iK = jnp.linalg.solve(Kuu, eye)
        iK = 0.5 * (iK + iK.T)                  # symmetrize the computed inverse
        Lq = jnp.tril(qLq)
        qS = Lq @ Lq.T
        _, ldK = jnp.linalg.slogdet(Kuu)
        _, ldS = jnp.linalg.slogdet(qS)
        kl = 0.5 * (jnp.trace(iK @ qS) + qmq @ (iK @ qmq) - M + ldK - ldS)
        return iK, qS, kl

    iK_q, qS_q, kl_q = jax.vmap(per_q)(z, ls, var, q_L, jnp.transpose(q_m))
    kl = jnp.sum(kl_q)

    # ---- stacked operands (row index r = q*M + m), zero-padded to QMp rows -------
    iKblk = jnp.zeros((QMp, QMp), f32)
    SQaug = jnp.zeros((R, QMp), f32)
    for q in range(Q):
        sl = slice(q * M, (q + 1) * M)
        iKblk = iKblk.at[sl, sl].set(iK_q[q])
        SQaug = SQaug.at[sl, sl].set(qS_q[q])
    # TODO(synk): for large Q the dense block-diagonal wastes Q x MXU work / DMA;
    # switch to a batched (Q,M,M) x (Q,M,TN) dot_general once Q*M grows past ~128.
    SQaug = SQaug.at[QMp, :QM].set(jnp.transpose(q_m).reshape(QM))   # mean row

    z_stack = jnp.zeros((QMp, 1), f32).at[:QM, 0].set(z.reshape(QM))
    neg_i2ls = jnp.zeros((QMp, 1), f32).at[:QM, 0].set(jnp.repeat(-0.5 / (ls * ls), M))
    scale = jnp.zeros((D, QMp, 1), f32).at[:, :QM, 0].set(
        jnp.repeat(W * var[None, :], M, axis=1))                     # w_dq * var_q

    # Per-output constants, pre-folded with the batch rate; the Kff diagonal
    # (sum_q w^2 var) is folded into the additive constant handled in glue.
    kffd = jnp.sum(W * W * var[None, :], axis=1)                     # (D,)
    c0 = rates * (-0.5 * jnp.log(2.0 * jnp.pi * sig2) - 0.5 * kffd / sig2)
    c1 = 0.5 * rates / sig2                                          # (D,)

    # ---- lane-dense data layout, padded to a multiple of the 128-aligned tile ----
    assert tile_n % 128 == 0, "tile_n must be a multiple of 128"
    tn = min(tile_n, ((N + 127) // 128) * 128)
    Npad = ((N + tn - 1) // tn) * tn
    x2 = jnp.zeros((D, 1, Npad), f32).at[:, 0, :N].set(x.astype(f32)[..., 0])
    y2 = jnp.zeros((D, 1, Npad), f32).at[:, 0, :N].set(y.astype(f32)[..., 0])
    valid = (jnp.arange(Npad) < N).astype(f32)
    c1v = c1[:, None, None] * valid[None, None, :]                   # (D, 1, Npad)

    T_total = Npad // tn
    S = n_splits if (n_splits > 0 and T_total % n_splits == 0) else 1
    T = T_total // S

    cdt = jnp.bfloat16 if use_bf16_kfu else f32
    iKblk_c = iKblk.astype(cdt)

    # VMEM budget: Kfu/A/G intermediates + double-buffered (1, tn) streams; cap at
    # 48 MiB so v7x (64 MiB physical) keeps headroom.
    est = 4 * tn * (4 * QMp + 40) + 4 * (2 * QMp * QMp + R * QMp)
    vmem_limit = int(min(max(4 * est, 16 * 2 ** 20), 48 * 2 ** 20))

    kernel = _make_svmogp_kernel(QMp, use_bf16_kfu)

    part = pl.pallas_call(
        kernel,
        out_shape=jax.ShapeDtypeStruct((D, S, 1, 1), f32),
        grid=(D, S, T),
        in_specs=[
            pl.BlockSpec((None, 1, tn), lambda d, s, t: (d, 0, s * T + t)),    # x
            pl.BlockSpec((None, 1, tn), lambda d, s, t: (d, 0, s * T + t)),    # y
            pl.BlockSpec((None, 1, tn), lambda d, s, t: (d, 0, s * T + t)),    # c1 (masked)
            pl.BlockSpec((QMp, 1), lambda d, s, t: (0, 0)),                    # stacked z
            pl.BlockSpec((QMp, 1), lambda d, s, t: (0, 0)),                    # -0.5/ls^2
            pl.BlockSpec((None, QMp, 1), lambda d, s, t: (d, 0, 0)),           # w_dq*var_q
            pl.BlockSpec((QMp, QMp), lambda d, s, t: (0, 0)),                  # iKuu block-diag
            pl.BlockSpec((R, QMp), lambda d, s, t: (0, 0)),                    # [qS blocks; q_m row]
        ],
        out_specs=pl.BlockSpec((None, None, 1, 1), lambda d, s, t: (d, s, 0, 0)),
        scratch_shapes=[pltpu.VMEM((1, tn), f32)],
        compiler_params=pltpu.CompilerParams(
            dimension_semantics=("parallel", "parallel", "arbitrary"),
            vmem_limit_bytes=vmem_limit),
    )(x2, y2, c1v, z_stack, neg_i2ls, scale, iKblk_c, SQaug)

    # part[d, s] = sum_n c1_d * ((y - m_f)^2 + vq);  expectation = N*c0_d - that.
    expectation = N * jnp.sum(c0) - jnp.sum(part)
    elbo = expectation - kl
    return -elbo


def _reference_neg_elbo(x, y, params):
    """Plain-JAX reference following the PyTorch spec (full S_f path)."""
    z = params["z"]; q_m = params["q_m"]; q_L = params["q_L"]
    W = params["W"]; ls = params["lengthscales"]; var = params["variances"]
    sig2 = params["noise_var"]; rates = params["batch_rates"]
    D, N, _ = x.shape
    Q, M = z.shape
    eye = jnp.eye(M, dtype=jnp.float32)

    def rbf(x1, x2, l, v):
        d = x1[:, None] - x2[None, :]
        return v * jnp.exp(-0.5 * d * d / (l * l))

    Kuu = [rbf(z[q], z[q], ls[q], var[q]) + 1e-5 * eye for q in range(Q)]
    iKuu = [jnp.linalg.solve(Kuu[q], eye) for q in range(Q)]
    qS = [jnp.tril(q_L[q]) @ jnp.tril(q_L[q]).T for q in range(Q)]

    expectation = 0.0
    for d in range(D):
        xd = x[d, :, 0]; yd = y[d, :, 0]
        m_f = jnp.zeros((N,), jnp.float32)
        S_f = jnp.zeros((N, N), jnp.float32)
        for q in range(Q):
            Kff_q = W[d, q] ** 2 * rbf(xd, xd, ls[q], var[q])
            Kfu = W[d, q] * rbf(xd, z[q], ls[q], var[q])
            A = Kfu @ iKuu[q]
            m_f = m_f + A @ q_m[:, q]
            S_f = S_f + Kff_q + A @ qS[q] @ A.T - A @ Kfu.T
        v_f = jnp.diag(S_f)
        ve = (-0.5 * jnp.log(2.0 * jnp.pi * sig2[d])
              - 0.5 * ((yd - m_f) ** 2 + v_f) / sig2[d])
        expectation = expectation + rates[d] * jnp.sum(ve)

    kl = 0.0
    for q in range(Q):
        mq = q_m[:, q]
        tr = jnp.trace(iKuu[q] @ qS[q])
        mahal = mq @ (iKuu[q] @ mq)
        _, ldK = jnp.linalg.slogdet(Kuu[q])
        _, ldS = jnp.linalg.slogdet(qS[q])
        kl = kl + 0.5 * (tr + mahal - M + ldK - ldS)
    return -(expectation - kl)


if __name__ == "__main__":
    # Small deterministic setup: D=2 outputs, Q=2 latent GPs, M=8 inducing, N=16 points.
    D, Q, M, N = 2, 2, 8, 16
    key = jax.random.PRNGKey(0)
    k_qm, k_W, k_x, k_y = jax.random.split(key, 4)

    params = {
        # z: linspace(0.1, 0.9, M) tiled over Q (input_dim == 1 branch of __init__)
        "z": jnp.tile(jnp.linspace(0.1, 0.9, M, dtype=jnp.float32)[None, :], (Q, 1)),
        "q_m": 2.0 * jax.random.normal(k_qm, (M, Q), dtype=jnp.float32),
        "q_L": jnp.tile(jnp.eye(M, dtype=jnp.float32)[None, :, :], (Q, 1, 1)),
        "W": 0.5 + 0.5 * jax.random.uniform(k_W, (D, Q), dtype=jnp.float32),
        # lengthscales sized so Kuu stays reasonably conditioned in f32 (standard
        # practice: lengthscale comparable to the inducing-point spacing + jitter).
        "lengthscales": jnp.array([0.10, 0.15], dtype=jnp.float32),
        "variances": jnp.array([1.0, 1.5], dtype=jnp.float32),
        "noise_var": jnp.array([0.1, 0.2], dtype=jnp.float32),
        "batch_rates": jnp.ones((D,), dtype=jnp.float32),
    }

    x = jax.random.uniform(k_x, (D, N, 1), dtype=jnp.float32)   # inputs per output
    y = jax.random.normal(k_y, (D, N, 1), dtype=jnp.float32)    # targets per output

    neg_elbo = svmogp_forward(x, y, params)
    jax.block_until_ready(neg_elbo)
    assert neg_elbo.shape == () and jnp.isfinite(neg_elbo)

    ref = _reference_neg_elbo(x, y, params)
    assert jnp.allclose(neg_elbo, ref, rtol=2e-3, atol=1e-2), (neg_elbo, ref)

    print("KERNEL_OK")
</pallas_src>

<mosaic_0001>
module attributes {stable_mosaic.version = 11 : i64} {
  func.func @kernel(%arg0: i32, %arg1: i32, %arg2: i32, %arg3: memref<1x1x128xf32, #tpu.memory_space<vmem>>, %arg4: memref<1x1x128xf32, #tpu.memory_space<vmem>>, %arg5: memref<1x1x128xf32, #tpu.memory_space<vmem>>, %arg6: memref<16x1xf32, #tpu.memory_space<vmem>>, %arg7: memref<16x1xf32, #tpu.memory_space<vmem>>, %arg8: memref<1x16x1xf32, #tpu.memory_space<vmem>>, %arg9: memref<16x16xf32, #tpu.memory_space<vmem>>, %arg10: memref<24x16xf32, #tpu.memory_space<vmem>>, %arg11: memref<1x1x1x1xf32, #tpu.memory_space<vmem>>, %arg12: memref<1x128xf32, #tpu.memory_space<vmem>>) attributes {dimension_semantics = [#tpu.dimension_semantics<parallel>, #tpu.dimension_semantics<parallel>, #tpu.dimension_semantics<arbitrary>], iteration_bounds = array<i64: 2, 1, 1>, scalar_prefetch = 0 : i64, scratch_operands = 1 : i64, tpu.core_type = #tpu.core_type<tc>, window_params = [{transform_indices = @transform_0, window_bounds = array<i64: 1, 1, 128>}, {transform_indices = @transform_1, window_bounds = array<i64: 1, 1, 128>}, {transform_indices = @transform_2, window_bounds = array<i64: 1, 1, 128>}, {pipeline_mode = #tpu.pipeline_mode<synchronous>, transform_indices = @transform_3, window_bounds = array<i64: 16, 1>}, {pipeline_mode = #tpu.pipeline_mode<synchronous>, transform_indices = @transform_4, window_bounds = array<i64: 16, 1>}, {transform_indices = @transform_5, window_bounds = array<i64: 1, 16, 1>}, {pipeline_mode = #tpu.pipeline_mode<synchronous>, transform_indices = @transform_6, window_bounds = array<i64: 16, 16>}, {pipeline_mode = #tpu.pipeline_mode<synchronous>, transform_indices = @transform_7, window_bounds = array<i64: 24, 16>}, {transform_indices = @transform_8, window_bounds = array<i64: 1, 1, 1, 1>}]} {
    %c0_i32 = arith.constant 0 : i32
    %0 = arith.cmpi eq, %arg2, %c0_i32 : i32
    %1 = arith.extui %0 : i1 to i32
    %c0_i32_0 = arith.constant 0 : i32
    %2 = arith.cmpi ne, %1, %c0_i32_0 : i32
    scf.if %2 {
      %cst_28 = arith.constant 0.000000e+00 : f32
      %42 = vector.broadcast %cst_28 : f32 to vector<1x128xf32>
      %c0_29 = arith.constant 0 : index
      %c0_30 = arith.constant 0 : index
      %43 = vector.load %arg12[%c0_29, %c0_30] : memref<1x128xf32, #tpu.memory_space<vmem>>, vector<1x128xf32>
      tpu.vector_store %arg12[%c0_29, %c0_30], %42 {strides = array<i32>} : memref<1x128xf32, #tpu.memory_space<vmem>>, vector<1x128xf32>,
    } else {
    }
    %c0 = arith.constant 0 : index
    %c0_1 = arith.constant 0 : index
    %c0_2 = arith.constant 0 : index
    %3 = vector.load %arg3[%c0, %c0_1, %c0_2] : memref<1x1x128xf32, #tpu.memory_space<vmem>>, vector<1x1x128xf32>
    %4 = vector.shape_cast %3 : vector<1x1x128xf32> to vector<1x128xf32>
    %c0_3 = arith.constant 0 : index
    %c0_4 = arith.constant 0 : index
    %5 = vector.load %arg6[%c0_3, %c0_4] : memref<16x1xf32, #tpu.memory_space<vmem>>, vector<16x1xf32>
    %6 = vector.broadcast %4 : vector<1x128xf32> to vector<16x128xf32>
    %7 = vector.broadcast %5 : vector<16x1xf32> to vector<16x128xf32>
    %8 = arith.subf %6, %7 : vector<16x128xf32>
    %c0_5 = arith.constant 0 : index
    %c0_6 = arith.constant 0 : index
    %9 = vector.load %arg7[%c0_5, %c0_6] : memref<16x1xf32, #tpu.memory_space<vmem>>, vector<16x1xf32>
    %10 = arith.mulf %8, %8 : vector<16x128xf32>
    %11 = vector.broadcast %9 : vector<16x1xf32> to vector<16x128xf32>
    %12 = arith.mulf %11, %10 : vector<16x128xf32>
    %c0_7 = arith.constant 0 : index
    %c0_8 = arith.constant 0 : index
    %c0_9 = arith.constant 0 : index
    %13 = vector.load %arg8[%c0_7, %c0_8, %c0_9] : memref<1x16x1xf32, #tpu.memory_space<vmem>>, vector<1x16x1xf32>
    %14 = vector.shape_cast %13 : vector<1x16x1xf32> to vector<16x1xf32>
    %15 = math.exp %12 : vector<16x128xf32>
    %16 = vector.broadcast %14 : vector<16x1xf32> to vector<16x128xf32>
    %17 = arith.mulf %16, %15 : vector<16x128xf32>
    %c0_10 = arith.constant 0 : index
    %c0_11 = arith.constant 0 : index
    %18 = vector.load %arg9[%c0_10, %c0_11] : memref<16x16xf32, #tpu.memory_space<vmem>>, vector<16x16xf32>
    %cst = arith.constant dense<0.000000e+00> : vector<16x128xf32>
    %19 = tpu.matmul %18, %17, %cst {dimension_numbers = #tpu.dot_dimension_numbers<[1], [0], [0], [1], [0, 0, 1, 1], [], []>} : vector<16x16xf32>, vector<16x128xf32>, vector<16x128xf32> -> vector<16x128xf32>
    %c0_12 = arith.constant 0 : index
    %c0_13 = arith.constant 0 : index
    %20 = vector.load %arg10[%c0_12, %c0_13] : memref<24x16xf32, #tpu.memory_space<vmem>>, vector<24x16xf32>
    %cst_14 = arith.constant dense<0.000000e+00> : vector<24x128xf32>
    %21 = tpu.matmul %20, %19, %cst_14 {dimension_numbers = #tpu.dot_dimension_numbers<[1], [0], [0], [1], [0, 0, 1, 1], [], []>} : vector<24x16xf32>, vector<16x128xf32>, vector<24x128xf32> -> vector<24x128xf32>
    %22 = vector.extract_strided_slice %21 {offsets = [16, 0], sizes = [1, 128], strides = [1, 1]} : vector<24x128xf32> to vector<1x128xf32>
    %23 = vector.extract_strided_slice %21 {offsets = [0, 0], sizes = [16, 128], strides = [1, 1]} : vector<24x128xf32> to vector<16x128xf32>
    %24 = arith.subf %23, %17 : vector<16x128xf32>
    %25 = arith.mulf %19, %24 : vector<16x128xf32>
    %cst_15 = arith.constant dense<0.000000e+00> : vector<128xf32>
    %26 = vector.multi_reduction <add>, %25, %cst_15 [0] : vector<16x128xf32> to vector<128xf32>
    %27 = vector.shape_cast %26 : vector<128xf32> to vector<1x128xf32>
    %c0_16 = arith.constant 0 : index
    %c0_17 = arith.constant 0 : index
    %c0_18 = arith.constant 0 : index
    %28 = vector.load %arg4[%c0_16, %c0_17, %c0_18] : memref<1x1x128xf32, #tpu.memory_space<vmem>>, vector<1x1x128xf32>
    %29 = vector.shape_cast %28 : vector<1x1x128xf32> to vector<1x128xf32>
    %30 = arith.subf %29, %22 : vector<1x128xf32>
    %c0_19 = arith.constant 0 : index
    %c0_20 = arith.constant 0 : index
    %31 = vector.load %arg12[%c0_19, %c0_20] : memref<1x128xf32, #tpu.memory_space<vmem>>, vector<1x128xf32>
    %c0_21 = arith.constant 0 : index
    %c0_22 = arith.constant 0 : index
    %c0_23 = arith.constant 0 : index
    %32 = vector.load %arg5[%c0_21, %c0_22, %c0_23] : memref<1x1x128xf32, #tpu.memory_space<vmem>>, vector<1x1x128xf32>
    %33 = vector.shape_cast %32 : vector<1x1x128xf32> to vector<1x128xf32>
    %34 = arith.mulf %30, %30 : vector<1x128xf32>
    %35 = arith.addf %34, %27 : vector<1x128xf32>
    %36 = arith.mulf %33, %35 : vector<1x128xf32>
    %37 = arith.addf %31, %36 : vector<1x128xf32>
    %c0_24 = arith.constant 0 : index
    %c0_25 = arith.constant 0 : index
    %38 = vector.load %arg12[%c0_24, %c0_25] : memref<1x128xf32, #tpu.memory_space<vmem>>, vector<1x128xf32>
    tpu.vector_store %arg12[%c0_24, %c0_25], %37 {strides = array<i32>} : memref<1x128xf32, #tpu.memory_space<vmem>>, vector<1x128xf32>,
    %c0_i32_26 = arith.constant 0 : i32
    %39 = arith.cmpi eq, %arg2, %c0_i32_26 : i32
    %40 = arith.extui %39 : i1 to i32
    %c0_i32_27 = arith.constant 0 : i32
    %41 = arith.cmpi ne, %40, %c0_i32_27 : i32
    scf.if %41 {
      %c0_28 = arith.constant 0 : index
      %c0_29 = arith.constant 0 : index
      %42 = vector.load %arg12[%c0_28, %c0_29] : memref<1x128xf32, #tpu.memory_space<vmem>>, vector<1x128xf32>
      %cst_30 = arith.constant dense<0.000000e+00> : vector<1xf32>
      %43 = vector.multi_reduction <add>, %42, %cst_30 [1] : vector<1x128xf32> to vector<1xf32>
      %44 = vector.shape_cast %43 : vector<1xf32> to vector<1x1xf32>
      %c0_31 = arith.constant 0 : index
      %c0_32 = arith.constant 0 : index
      %c0_33 = arith.constant 0 : index
      %c0_34 = arith.constant 0 : index
      %45 = vector.load %arg11[%c0_31, %c0_32, %c0_33, %c0_34] : memref<1x1x1x1xf32, #tpu.memory_space<vmem>>, vector<1x1x1x1xf32>
      %46 = vector.shape_cast %45 : vector<1x1x1x1xf32> to vector<1x1xf32>
      %47 = vector.shape_cast %44 : vector<1x1xf32> to vector<1x1x1x1xf32>
      tpu.vector_store %arg11[%c0_31, %c0_32, %c0_33, %c0_34], %47 {strides = array<i32>} : memref<1x1x1x1xf32, #tpu.memory_space<vmem>>, vector<1x1x1x1xf32>,
    } else {
    }
    return
  }
  func.func @transform_0(%arg0: i32, %arg1: i32, %arg2: i32) -> (i32, i32, i32) {
    %c1_i32 = arith.constant 1 : i32
    %0 = arith.muli %arg1, %c1_i32 : i32
    %1 = arith.addi %0, %arg2 : i32
    %c0_i32 = arith.constant 0 : i32
    %c0_i32_0 = arith.constant 0 : i32
    return %arg0, %c0_i32, %1 : i32, i32, i32
  }
  func.func @transform_1(%arg0: i32, %arg1: i32, %arg2: i32) -> (i32, i32, i32) {
    %c1_i32 = arith.constant 1 : i32
    %0 = arith.muli %arg1, %c1_i32 : i32
    %1 = arith.addi %0, %arg2 : i32
    %c0_i32 = arith.constant 0 : i32
    %c0_i32_0 = arith.constant 0 : i32
    return %arg0, %c0_i32, %1 : i32, i32, i32
  }
  func.func @transform_2(%arg0: i32, %arg1: i32, %arg2: i32) -> (i32, i32, i32) {
    %c1_i32 = arith.constant 1 : i32
    %0 = arith.muli %arg1, %c1_i32 : i32
    %1 = arith.addi %0, %arg2 : i32
    %c0_i32 = arith.constant 0 : i32
    %c0_i32_0 = arith.constant 0 : i32
    return %arg0, %c0_i32, %1 : i32, i32, i32
  }
  func.func @transform_3(%arg0: i32, %arg1: i32, %arg2: i32) -> (i32, i32) {
    %c0_i32 = arith.constant 0 : i32
    %c0_i32_0 = arith.constant 0 : i32
    %c0_i32_1 = arith.constant 0 : i32
    return %c0_i32, %c0_i32_0 : i32, i32
  }
  func.func @transform_4(%arg0: i32, %arg1: i32, %arg2: i32) -> (i32, i32) {
    %c0_i32 = arith.constant 0 : i32
    %c0_i32_0 = arith.constant 0 : i32
    %c0_i32_1 = arith.constant 0 : i32
    return %c0_i32, %c0_i32_0 : i32, i32
  }
  func.func @transform_5(%arg0: i32, %arg1: i32, %arg2: i32) -> (i32, i32, i32) {
    %c0_i32 = arith.constant 0 : i32
    %c0_i32_0 = arith.constant 0 : i32
    %c0_i32_1 = arith.constant 0 : i32
    return %arg0, %c0_i32, %c0_i32_0 : i32, i32, i32
  }
  func.func @transform_6(%arg0: i32, %arg1: i32, %arg2: i32) -> (i32, i32) {
    %c0_i32 = arith.constant 0 : i32
    %c0_i32_0 = arith.constant 0 : i32
    %c0_i32_1 = arith.constant 0 : i32
    return %c0_i32, %c0_i32_0 : i32, i32
  }
  func.func @transform_7(%arg0: i32, %arg1: i32, %arg2: i32) -> (i32, i32) {
    %c0_i32 = arith.constant 0 : i32
    %c0_i32_0 = arith.constant 0 : i32
    %c0_i32_1 = arith.constant 0 : i32
    return %c0_i32, %c0_i32_0 : i32, i32
  }
  func.func @transform_8(%arg0: i32, %arg1: i32, %arg2: i32) -> (i32, i32, i32, i32) {
    %c0_i32 = arith.constant 0 : i32
    %c0_i32_0 = arith.constant 0 : i32
    %c0_i32_1 = arith.constant 0 : i32
    return %arg0, %arg1, %c0_i32, %c0_i32_0 : i32, i32, i32, i32
  }
}

</mosaic_0001>

<llo_original>
// kernel: tpu_custom_call.1
$region0: #{tpu_custom_call.1}
  #allocation0 [shape = 'u32[]', space=smem, size = 0x4, offset = 0x4, fixed_abs, tag = 'smem constant byte address 0x4 - core index']
  #allocation1 [shape = 'u32[144,128]{1,0:T(1,128)}', space=vmem, size = 0x12000, scoped, tag = 'internal scratch']
  #allocation2 [shape = 'f32[1,128]{1,0:T(1,128)}', space=vmem, size = 0x200, scoped, tag = 'scratch operand']
  %s0 = inlined_call_operand.vmem [shape: f32[2,1,128], index: 0, kind: input, shape index: {}]
  %s1 = inlined_call_operand.vmem [shape: f32[2,1,128], index: 1, kind: input, shape index: {}]
  %s2 = inlined_call_operand.vmem [shape: f32[2,1,128], index: 2, kind: input, shape index: {}]
  %s3 = inlined_call_operand.vmem [shape: f32[16,1], index: 3, kind: input, shape index: {}]
  %s4 = inlined_call_operand.vmem [shape: f32[16,1], index: 4, kind: input, shape index: {}]
  %s5 = inlined_call_operand.vmem [shape: f32[2,16,1], index: 5, kind: input, shape index: {}]
  %s6 = inlined_call_operand.vmem [shape: f32[16,16], index: 6, kind: input, shape index: {}]
  %s7 = inlined_call_operand.vmem [shape: f32[24,16], index: 7, kind: input, shape index: {}]
  %s8 = inlined_call_operand.vmem [shape: f32[2,1,1,1], index: 8, kind: output, shape index: {}]
  %s9 = sld [smem:[#allocation0]]
  $region73: #{tpu_custom_call.1} parent=0
    _
  %s11 = ssub.s32 1, %s9
  %s12 = scalar_select 0, %s11, %s9
  loop: start=0, step=1, limit=4
  $region2: #{tpu_custom_call.1} parent=0 // loop_pre_header
    _
  $region3: #{tpu_custom_call.1} parent=0 // loop_header
    %s14 = sphi 0, %s18
    %p15 = scmp.ge.s32.totalorder %s14, 4
    %s21 = sphi 0, %s40
    %s22 = sphi 0, %s36
    %s23 = sphi 0, %s32
    %s24 = sphi 0, %s21
    %s25 = sphi 0, %s22
    %s26 = sphi 0, %s23
    %s27 = sphi 0, %s24
    %s28 = sphi 0, %s25
    %s29 = sphi 0, %s26
    %s47 = sphi 0, %s49
    %s50 = sphi 0, %s47
    %s51 = sphi 0, %s50
    %s67 = sphi 0, %s51
    %s77 = sphi 0, %s79
    %s80 = sphi 0, %s77
    %s81 = sphi 0, %s80
    %s97 = sphi 0, %s81
    %s107 = sphi 0, %s109
    %s110 = sphi 0, %s107
    %s111 = sphi 0, %s110
    %s127 = sphi 0, %s111
    %s131 = sphi 0, %s131
    %s133 = sphi 0, %s131
    %s134 = sphi 0, %s133
    %s148 = sphi 0, %s134
    %s152 = sphi 0, %s152
    %s154 = sphi 0, %s152
    %s155 = sphi 0, %s154
    %s169 = sphi 0, %s155
    %s175 = sphi 0, %s177
    %s178 = sphi 0, %s175
    %s179 = sphi 0, %s178
    %s195 = sphi 0, %s179
    %s199 = sphi 0, %s199
    %s201 = sphi 0, %s199
    %s202 = sphi 0, %s201
    %s216 = sphi 0, %s202
    %s220 = sphi 0, %s220
    %s222 = sphi 0, %s220
    %s223 = sphi 0, %s222
    %s237 = sphi 0, %s223
    %s245 = sphi 0, %s247
    %s248 = sphi 0, %s245
    %s249 = sphi 0, %s248
    %s265 = sphi 0, %s249
  $region4: #{tpu_custom_call.1} parent=0 // loop_header_branch
    %17 = sbr.rel (%p15) target = $region8
  $region5: #{tpu_custom_call.1} parent=0 // loop_body
    %s19 = ssub.s32 %s14, 1
    %s20 = ssub.s32 %s14, 2
    %s30 = sadd.s32 1, %s23
    %p31 = scmp.ge.s32.totalorder %s30, 1
    %s32 = scalar_select %p31, 0, %s30
    %s33 = sadd.s32 1, %s22
    %s34 = scalar_select %p31, %s33, %s22
    %p35 = scmp.ge.s32.totalorder %s34, 1
    %s36 = scalar_select %p35, 0, %s34
    %s37 = sadd.s32 1, %s21
    %s38 = scalar_select %p35, %s37, %s21
    %p39 = scmp.ge.s32.totalorder %s38, 2
    %s40 = scalar_select %p39, 0, %s38
    %s41 = sadd.s32 %s22, %s23
    %s42 = sadd.s32 %s36, %s32
    %s43 = ssub.s32 %s21, %s40
    %s44 = ssub.s32 %s41, %s42
    %s45 = sor.u32 %s43, %s44
    %p46 = scmp.eq.s32.totalorder %s45, 0
    %s48 = sadd.s32 %s47, 1
    %s49 = scalar_select %p46, %s47, %s48
    %p52 = pneg %p46
    %p53 = scmp.eq.s32.totalorder %s14, 1
    %p54 = por %p52, %p53
    %p55 = scmp.ne.s32.totalorder %s47, %s50
    %p56 = scmp.eq.s32.totalorder %s14, 0
    %p57 = por %p55, %p56
    %p58 = scmp.ne.s32.totalorder %s47, %s50
    %p59 = scmp.eq.s32.totalorder %s19, 1
    %p60 = por %p58, %p59
    %p61 = scmp.ne.s32.totalorder %s50, %s51
    %p62 = scmp.eq.s32.totalorder %s19, 0
    %p63 = por %p61, %p62
    %p64 = scmp.ne.s32.totalorder %s50, %s51
    %p65 = scmp.eq.s32.totalorder %s20, 1
    %p66 = por %p64, %p65
    %p68 = scmp.ne.s32.totalorder %s51, %s67
    %p69 = scmp.eq.s32.totalorder %s20, 0
    %p70 = por %p68, %p69
    %s71 = sadd.s32 %s22, %s23
    %s72 = sadd.s32 %s36, %s32
    %s73 = ssub.s32 %s21, %s40
    %s74 = ssub.s32 %s71, %s72
    %s75 = sor.u32 %s73, %s74
    %p76 = scmp.eq.s32.totalorder %s75, 0
    %s78 = sadd.s32 %s77, 1
    %s79 = scalar_select %p76, %s77, %s78
    %p82 = pneg %p76
    %p83 = scmp.eq.s32.totalorder %s14, 1
    %p84 = por %p82, %p83
    %p85 = scmp.ne.s32.totalorder %s77, %s80
    %p86 = scmp.eq.s32.totalorder %s14, 0
    %p87 = por %p85, %p86
    %p88 = scmp.ne.s32.totalorder %s77, %s80
    %p89 = scmp.eq.s32.totalorder %s19, 1
    %p90 = por %p88, %p89
    %p91 = scmp.ne.s32.totalorder %s80, %s81
    %p92 = scmp.eq.s32.totalorder %s19, 0
    %p93 = por %p91, %p92
    %p94 = scmp.ne.s32.totalorder %s80, %s81
    %p95 = scmp.eq.s32.totalorder %s20, 1
    %p96 = por %p94, %p95
    %p98 = scmp.ne.s32.totalorder %s81, %s97
    %p99 = scmp.eq.s32.totalorder %s20, 0
    %p100 = por %p98, %p99
    %s101 = sadd.s32 %s22, %s23
    %s102 = sadd.s32 %s36, %s32
    %s103 = ssub.s32 %s21, %s40
    %s104 = ssub.s32 %s101, %s102
    %s105 = sor.u32 %s103, %s104
    %p106 = scmp.eq.s32.totalorder %s105, 0
    %s108 = sadd.s32 %s107, 1
    %s109 = scalar_select %p106, %s107, %s108
    %p112 = pneg %p106
    %p113 = scmp.eq.s32.totalorder %s14, 1
    %p114 = por %p112, %p113
    %p115 = scmp.ne.s32.totalorder %s107, %s110
    %p116 = scmp.eq.s32.totalorder %s14, 0
    %p117 = por %p115, %p116
    %p118 = scmp.ne.s32.totalorder %s107, %s110
    %p119 = scmp.eq.s32.totalorder %s19, 1
    %p120 = por %p118, %p119
    %p121 = scmp.ne.s32.totalorder %s110, %s111
    %p122 = scmp.eq.s32.totalorder %s19, 0
    %p123 = por %p121, %p122
    %p124 = scmp.ne.s32.totalorder %s110, %s111
    %p125 = scmp.eq.s32.totalorder %s20, 1
    %p126 = por %p124, %p125
    %p128 = scmp.ne.s32.totalorder %s111, %s127
    %p129 = scmp.eq.s32.totalorder %s20, 0
    %p130 = por %p128, %p129
    %s132 = sadd.s32 %s131, 1
    %p135 = scmp.eq.s32.totalorder %s14, 1
    %p136 = scmp.ne.s32.totalorder %s131, %s133
    %p137 = scmp.eq.s32.totalorder %s14, 0
    %p138 = por %p136, %p137
    %p139 = scmp.ne.s32.totalorder %s131, %s133
    %p140 = scmp.eq.s32.totalorder %s19, 1
    %p141 = por %p139, %p140
    %p142 = scmp.ne.s32.totalorder %s133, %s134
    %p143 = scmp.eq.s32.totalorder %s19, 0
    %p144 = por %p142, %p143
    %p145 = scmp.ne.s32.totalorder %s133, %s134
    %p146 = scmp.eq.s32.totalorder %s20, 1
    %p147 = por %p145, %p146
    %p149 = scmp.ne.s32.totalorder %s134, %s148
    %p150 = scmp.eq.s32.totalorder %s20, 0
    %p151 = por %p149, %p150
    %s153 = sadd.s32 %s152, 1
    %p156 = scmp.eq.s32.totalorder %s14, 1
    %p157 = scmp.ne.s32.totalorder %s152, %s154
    %p158 = scmp.eq.s32.totalorder %s14, 0
    %p159 = por %p157, %p158
    %p160 = scmp.ne.s32.totalorder %s152, %s154
    %p161 = scmp.eq.s32.totalorder %s19, 1
    %p162 = por %p160, %p161
    %p163 = scmp.ne.s32.totalorder %s154, %s155
    %p164 = scmp.eq.s32.totalorder %s19, 0
    %p165 = por %p163, %p164
    %p166 = scmp.ne.s32.totalorder %s154, %s155
    %p167 = scmp.eq.s32.totalorder %s20, 1
    %p168 = por %p166, %p167
    %p170 = scmp.ne.s32.totalorder %s155, %s169
    %p171 = scmp.eq.s32.totalorder %s20, 0
    %p172 = por %p170, %p171
    %s173 = ssub.s32 %s21, %s40
    %p174 = scmp.eq.s32.totalorder %s173, 0
    %s176 = sadd.s32 %s175, 1
    %s177 = scalar_select %p174, %s175, %s176
    %p180 = pneg %p174
    %p181 = scmp.eq.s32.totalorder %s14, 1
    %p182 = por %p180, %p181
    %p183 = scmp.ne.s32.totalorder %s175, %s178
    %p184 = scmp.eq.s32.totalorder %s14, 0
    %p185 = por %p183, %p184
    %p186 = scmp.ne.s32.totalorder %s175, %s178
    %p187 = scmp.eq.s32.totalorder %s19, 1
    %p188 = por %p186, %p187
    %p189 = scmp.ne.s32.totalorder %s178, %s179
    %p190 = scmp.eq.s32.totalorder %s19, 0
    %p191 = por %p189, %p190
    %p192 = scmp.ne.s32.totalorder %s178, %s179
    %p193 = scmp.eq.s32.totalorder %s20, 1
    %p194 = por %p192, %p193
    %p196 = scmp.ne.s32.totalorder %s179, %s195
    %p197 = scmp.eq.s32.totalorder %s20, 0
    %p198 = por %p196, %p197
    %s200 = sadd.s32 %s199, 1
    %p203 = scmp.eq.s32.totalorder %s14, 1
    %p204 = scmp.ne.s32.totalorder %s199, %s201
    %p205 = scmp.eq.s32.totalorder %s14, 0
    %p206 = por %p204, %p205
    %p207 = scmp.ne.s32.totalorder %s199, %s201
    %p208 = scmp.eq.s32.totalorder %s19, 1
    %p209 = por %p207, %p208
    %p210 = scmp.ne.s32.totalorder %s201, %s202
    %p211 = scmp.eq.s32.totalorder %s19, 0
    %p212 = por %p210, %p211
    %p213 = scmp.ne.s32.totalorder %s201, %s202
    %p214 = scmp.eq.s32.totalorder %s20, 1
    %p215 = por %p213, %p214
    %p217 = scmp.ne.s32.totalorder %s202, %s216
    %p218 = scmp.eq.s32.totalorder %s20, 0
    %p219 = por %p217, %p218
    %s221 = sadd.s32 %s220, 1
    %p224 = scmp.eq.s32.totalorder %s14, 1
    %p225 = scmp.ne.s32.totalorder %s220, %s222
    %p226 = scmp.eq.s32.totalorder %s14, 0
    %p227 = por %p225, %p226
    %p228 = scmp.ne.s32.totalorder %s220, %s222
    %p229 = scmp.eq.s32.totalorder %s19, 1
    %p230 = por %p228, %p229
    %p231 = scmp.ne.s32.totalorder %s222, %s223
    %p232 = scmp.eq.s32.totalorder %s19, 0
    %p233 = por %p231, %p232
    %p234 = scmp.ne.s32.totalorder %s222, %s223
    %p235 = scmp.eq.s32.totalorder %s20, 1
    %p236 = por %p234, %p235
    %p238 = scmp.ne.s32.totalorder %s223, %s237
    %p239 = scmp.eq.s32.totalorder %s20, 0
    %p240 = por %p238, %p239
    %s241 = ssub.s32 %s21, %s40
    %s242 = ssub.s32 %s22, %s36
    %s243 = sor.u32 %s241, %s242
    %p244 = scmp.eq.s32.totalorder %s243, 0
    %s246 = sadd.s32 %s245, 1
    %s247 = scalar_select %p244, %s245, %s246
    %p250 = pneg %p244
    %p251 = scmp.eq.s32.totalorder %s14, 1
    %p252 = por %p250, %p251
    %p253 = scmp.ne.s32.totalorder %s245, %s248
    %p254 = scmp.eq.s32.totalorder %s14, 0
    %p255 = por %p253, %p254
    %p256 = scmp.ne.s32.totalorder %s245, %s248
    %p257 = scmp.eq.s32.totalorder %s19, 1
    %p258 = por %p256, %p257
    %p259 = scmp.ne.s32.totalorder %s248, %s249
    %p260 = scmp.eq.s32.totalorder %s19, 0
    %p261 = por %p259, %p260
    %p262 = scmp.ne.s32.totalorder %s248, %s249
    %p263 = scmp.eq.s32.totalorder %s20, 1
    %p264 = por %p262, %p263
    %p266 = scmp.ne.s32.totalorder %s249, %s265
    %p267 = scmp.eq.s32.totalorder %s20, 0
    %p268 = por %p266, %p267
    %p269 = scmp.le.s32.totalorder 1, %s14
    %p270 = scmp.lt.s32.totalorder %s14, 3
    %p271 = pnand %p269, %p270
    %p272 = pneg %p271
    // Predicated region
    $region9: #{tpu_custom_call.1} parent=5 // pred_check
      _
    $region10: #{tpu_custom_call.1} parent=5 // pred_check_branch
      %274 = sbr.rel (%p271) target = $region12
    $region11: #{tpu_custom_call.1} parent=5 // pred_region
      %s275 = ssub.s32 %s14, 1
      // Predicated region
      $region13: #{tpu_custom_call.1} parent=11 // pred_check
        %p276 = pneg %p144
      $region14: #{tpu_custom_call.1} parent=11 // pred_check_branch
        %278 = sbr.rel (%p276) target = $region16
      $region15: #{tpu_custom_call.1} parent=11 // pred_region
        _
      $region16: #{tpu_custom_call.1} parent=11 // pred_fallthru
        _
      // Predicated region
      $region17: #{tpu_custom_call.1} parent=11 // pred_check
        %p279 = pneg %p165
      $region18: #{tpu_custom_call.1} parent=11 // pred_check_branch
        %281 = sbr.rel (%p279) target = $region20
      $region19: #{tpu_custom_call.1} parent=11 // pred_region
        _
      $region20: #{tpu_custom_call.1} parent=11 // pred_fallthru
        _
      // Predicated region
      $region21: #{tpu_custom_call.1} parent=11 // pred_check
        %p282 = pneg %p212
      $region22: #{tpu_custom_call.1} parent=11 // pred_check_branch
        %284 = sbr.rel (%p282) target = $region24
      $region23: #{tpu_custom_call.1} parent=11 // pred_region
        _
      $region24: #{tpu_custom_call.1} parent=11 // pred_fallthru
        _
      // Predicated region
      $region25: #{tpu_custom_call.1} parent=11 // pred_check
        %p285 = pneg %p233
      $region26: #{tpu_custom_call.1} parent=11 // pred_check_branch
        %287 = sbr.rel (%p285) target = $region28
      $region27: #{tpu_custom_call.1} parent=11 // pred_region
        _
      $region28: #{tpu_custom_call.1} parent=11 // pred_fallthru
        _
    $region12: #{tpu_custom_call.1} parent=5 // pred_fallthru
      _
    %p288 = scmp.lt.s32.totalorder %s14, 2
    // Predicated region
    $region29: #{tpu_custom_call.1} parent=5 // pred_check
      %p289 = pneg %p288
    $region30: #{tpu_custom_call.1} parent=5 // pred_check_branch
      %291 = sbr.rel (%p289) target = $region32
    $region31: #{tpu_custom_call.1} parent=5 // pred_region
      // Predicated region
      $region33: #{tpu_custom_call.1} parent=31 // pred_check
        %p292 = pneg %p57
      $region34: #{tpu_custom_call.1} parent=31 // pred_check_branch
        %294 = sbr.rel (%p292) target = $region36
      $region35: #{tpu_custom_call.1} parent=31 // pred_region
        %s295 = sadd.s32 %s22, %s23
        %p296 = scmp.lt.s32.totalorder %s21, 1
        %s297 = scalar_select %p296, %s21, 1
        %p298 = scmp.lt.s32.totalorder %s295, 0
        %s299 = scalar_select %p298, %s295, 0
        %s300 = sadd.s32 %s299, %s297
        %s301 = scalar_lea.vmem %s0, %s300
        %s302 = sadd.s32 %s22, %s23
      $region36: #{tpu_custom_call.1} parent=31 // pred_fallthru
        _
      // Predicated region
      $region37: #{tpu_custom_call.1} parent=31 // pred_check
        %p303 = pneg %p87
      $region38: #{tpu_custom_call.1} parent=31 // pred_check_branch
        %305 = sbr.rel (%p303) target = $region40
      $region39: #{tpu_custom_call.1} parent=31 // pred_region
        %s306 = sadd.s32 %s22, %s23
        %p307 = scmp.lt.s32.totalorder %s21, 1
        %s308 = scalar_select %p307, %s21, 1
        %p309 = scmp.lt.s32.totalorder %s306, 0
        %s310 = scalar_select %p309, %s306, 0
        %s311 = sadd.s32 %s310, %s308
        %s312 = scalar_lea.vmem %s1, %s311
        %s313 = sadd.s32 %s22, %s23
      $region40: #{tpu_custom_call.1} parent=31 // pred_fallthru
        _
      // Predicated region
      $region41: #{tpu_custom_call.1} parent=31 // pred_check
        %p314 = pneg %p117
      $region42: #{tpu_custom_call.1} parent=31 // pred_check_branch
        %316 = sbr.rel (%p314) target = $region44
      $region43: #{tpu_custom_call.1} parent=31 // pred_region
        %s317 = sadd.s32 %s22, %s23
        %p318 = scmp.lt.s32.totalorder %s21, 1
        %s319 = scalar_select %p318, %s21, 1
        %p320 = scmp.lt.s32.totalorder %s317, 0
        %s321 = scalar_select %p320, %s317, 0
        %s322 = sadd.s32 %s321, %s319
        %s323 = scalar_lea.vmem %s2, %s322
        %s324 = sadd.s32 %s22, %s23
      $region44: #{tpu_custom_call.1} parent=31 // pred_fallthru
        _
      // Predicated region
      $region45: #{tpu_custom_call.1} parent=31 // pred_check
        %p325 = pneg %p185
      $region46: #{tpu_custom_call.1} parent=31 // pred_check_branch
        %327 = sbr.rel (%p325) target = $region48
      $region47: #{tpu_custom_call.1} parent=31 // pred_region
        %p328 = scmp.lt.s32.totalorder %s21, 1
        %s329 = scalar_select %p328, %s21, 1
        %s330 = smul.addr %s329, 2
        %s331 = smul.addr %s330, 8
        %s332 = scalar_lea.vmem %s5, %s331
      $region48: #{tpu_custom_call.1} parent=31 // pred_fallthru
        _
    $region32: #{tpu_custom_call.1} parent=5 // pred_fallthru
      _
    %p333 = scmp.le.s32.totalorder 1, %s14
    %p334 = scmp.lt.s32.totalorder %s14, 3
    %p335 = pnand %p333, %p334
    %p336 = pneg %p335
    // Predicated region
    $region49: #{tpu_custom_call.1} parent=5 // pred_check
      _
    $region50: #{tpu_custom_call.1} parent=5 // pred_check_branch
      %338 = sbr.rel (%p335) target = $region52
    $region51: #{tpu_custom_call.1} parent=5 // pred_region
      %s339 = ssub.s32 %s14, 1
      %s340 = sadd.s32 %s25, %s26
      %p341 = scmp.lt.s32.totalorder %s24, 1
      %s342 = scalar_select %p341, %s24, 1
      %p343 = scmp.lt.s32.totalorder %s340, 0
      %s344 = scalar_select %p343, %s340, 0
      %s345 = sadd.s32 %s344, %s342
      %s346 = scalar_lea.vmem %s0, %s345
      %p347 = pneg %p63
      %p348 = pneg %p60
      %s349 = sadd.s32 %s25, %s26
      %p350 = scmp.lt.s32.totalorder %s24, 1
      %s351 = scalar_select %p350, %s24, 1
      %p352 = scmp.lt.s32.totalorder %s349, 0
      %s353 = scalar_select %p352, %s349, 0
      %s354 = sadd.s32 %s353, %s351
      %s355 = scalar_lea.vmem %s1, %s354
      %p356 = pneg %p93
      %p357 = pneg %p90
      %s358 = sadd.s32 %s25, %s26
      %p359 = scmp.lt.s32.totalorder %s24, 1
      %s360 = scalar_select %p359, %s24, 1
      %p361 = scmp.lt.s32.totalorder %s358, 0
      %s362 = scalar_select %p361, %s358, 0
      %s363 = sadd.s32 %s362, %s360
      %s364 = scalar_lea.vmem %s2, %s363
      %p365 = pneg %p123
      %p366 = pneg %p120
      %p367 = pneg %p144
      %p368 = pneg %p141
      %p369 = pneg %p165
      %p370 = pneg %p162
      %p371 = scmp.lt.s32.totalorder %s24, 1
      %s372 = scalar_select %p371, %s24, 1
      %s373 = smul.addr %s372, 2
      %s374 = smul.addr %s373, 8
      %s375 = scalar_lea.vmem %s5, %s374
      %p376 = pneg %p191
      %p377 = pneg %p188
      %p378 = pneg %p212
      %p379 = pneg %p209
      %p380 = pneg %p233
      %p381 = pneg %p230
      %p382 = pneg %p261
      %p383 = pneg %p258
      %p384 = scmp.lt.s32.totalorder %s24, 1
      %s385 = scalar_select %p384, %s24, 1
      %p386 = scmp.lt.s32.totalorder %s25, 0
      %s387 = scalar_select %p386, %s25, 0
      %s388 = sadd.s32 %s387, %s385
      %s389 = scalar_lea.vmem %s8, %s388
      %s390 = sadd.s32 %s25, %s26
      %p391 = scmp.lt.s32.totalorder %s24, 1
      %s392 = scalar_select %p391, %s24, 1
      %p393 = scmp.lt.s32.totalorder %s390, 0
      %s394 = scalar_select %p393, %s390, 0
      %s395 = sadd.s32 %s394, %s392
      %s396 = scalar_lea.vmem %s0, %s395
      %s397 = sadd.s32 %s25, %s26
      %s398 = sadd.s32 %s25, %s26
      %p399 = scmp.lt.s32.totalorder %s24, 1
      %s400 = scalar_select %p399, %s24, 1
      %p401 = scmp.lt.s32.totalorder %s398, 0
      %s402 = scalar_select %p401, %s398, 0
      %s403 = sadd.s32 %s402, %s400
      %s404 = scalar_lea.vmem %s1, %s403
      %s405 = sadd.s32 %s25, %s26
      %s406 = sadd.s32 %s25, %s26
      %p407 = scmp.lt.s32.totalorder %s24, 1
      %s408 = scalar_select %p407, %s24, 1
      %p409 = scmp.lt.s32.totalorder %s406, 0
      %s410 = scalar_select %p409, %s406, 0
      %s411 = sadd.s32 %s410, %s408
      %s412 = scalar_lea.vmem %s2, %s411
      %s413 = sadd.s32 %s25, %s26
      %p414 = scmp.lt.s32.totalorder %s24, 1
      %s415 = scalar_select %p414, %s24, 1
      %s416 = smul.addr %s415, 2
      %s417 = smul.addr %s416, 8
      %s418 = scalar_lea.vmem %s5, %s417
      %p419 = scmp.lt.s32.totalorder %s24, 1
      %s420 = scalar_select %p419, %s24, 1
      %p421 = scmp.lt.s32.totalorder %s25, 0
      %s422 = scalar_select %p421, %s25, 0
      %s423 = sadd.s32 %s422, %s420
      %s424 = scalar_lea.vmem %s8, %s423
      %p425 = scmp.eq.s32.totalorder %s26, 0
      // Predicated region
      $region53: #{tpu_custom_call.1} parent=51 // pred_check
        %p426 = pneg %p425
      $region54: #{tpu_custom_call.1} parent=51 // pred_check_branch
        %428 = sbr.rel (%p426) target = $region56
      $region55: #{tpu_custom_call.1} parent=51 // pred_region
        %429 = vst [vmem:[#allocation2] sm:$0x1] 0.0
      $region56: #{tpu_custom_call.1} parent=51 // pred_fallthru
        _
      %v430 = vld [vmem:[%s396] sm:$0x1]
      %v431 = vld [vmem:[%s3] sm:$0xff]
      %v432 = vld [vmem:[%s3 + $0x8] sm:$0xff]
      %v434 = vlaneseq
      %v435 = vshrl.u32 %v434, 7
      %v436 = vsub.s32 0, %v435
      %v437 = vrot.slane %v430, %v436
      %440 = vset.pattern.permute.xlu0 0
      %441 = vperm.xlu0 %440, %v431
      %v442 = vpop.permute.xlu0 %441
      %445 = vset.pattern.permute.xlu0 0
      %446 = vperm.xlu0 %445, %v432
      %v447 = vpop.permute.xlu0 %446
      %v449 = vsub.f32 %v437, %v442
      %v450 = vsub.f32 %v437, %v447
      %v451 = vld [vmem:[%s4] sm:$0xff]
      %v452 = vld [vmem:[%s4 + $0x8] sm:$0xff]
      %v453 = vmul.f32 %v449, %v449
      %v454 = vmul.f32 %v450, %v450
      %456 = vset.pattern.permute.xlu0 0
      %457 = vperm.xlu0 %456, %v451
      %v458 = vpop.permute.xlu0 %457
      %461 = vset.pattern.permute.xlu0 0
      %462 = vperm.xlu0 %461, %v452
      %v463 = vpop.permute.xlu0 %462
      %v465 = vmul.f32 %v458, %v453
      %v466 = vmul.f32 %v463, %v454
      %v467 = vld [vmem:[%s418] sm:$0xff]
      %v468 = vld [vmem:[%s418 + $0x8] sm:$0xff]
      %v469 = vmul.f32 %v465, 1.442695
      %v470 = vpow.pop %v469
      %v471 = vmul.f32 %v466, 1.442695
      %v472 = vpow.pop %v471
      %474 = vset.pattern.permute.xlu0 0
      %475 = vperm.xlu0 %474, %v467
      %v476 = vpop.permute.xlu0 %475
      %479 = vset.pattern.permute.xlu0 0
      %480 = vperm.xlu0 %479, %v468
      %v481 = vpop.permute.xlu0 %480
      %v483 = vmul.f32 %v476, %v470
      %v484 = vmul.f32 %v481, %v472
      %v485 = vld [vmem:[%s6] sm:$0xff]
      %v486 = vld [vmem:[%s6 + $0x8] sm:$0xff]
      %vm487 = vcmask 130048
      %v489 = vsel %vm487, %v485, 0
      %v492 = vsel %vm487, %v486, 0
      %494 = vmatprep.subr.mxu0 0.0
      %495 = vmatpush1.msra.mxu0 0.0
      %496 = vmatprep.subr.mxu0 0.0
      %497 = vmatpush1.msra.mxu0 0.0
      %498 = vmatprep.subr.mxu0 0.0
      %499 = vmatpush1.msra.mxu0 0.0
      %500 = vmatprep.subr.mxu0 0.0
      %501 = vmatpush1.msra.mxu0 0.0
      %502 = vmatprep.subr.mxu0 0.0
      %503 = vmatpush1.msra.mxu0 0.0
      %504 = vmatprep.subr.mxu0 0.0
      %505 = vmatpush1.msra.mxu0 0.0
      %506 = vmatprep.subr.mxu0 0.0
      %507 = vmatpush1.msra.mxu0 0.0
      %508 = vmatprep.subr.mxu0 0.0
      %509 = vmatpush1.msra.mxu0 0.0
      %510 = vmatprep.subr.mxu0 0.0
      %511 = vmatpush1.msra.mxu0 0.0
      %512 = vmatprep.subr.mxu0 0.0
      %513 = vmatpush1.msra.mxu0 0.0
      %514 = vmatprep.subr.mxu0 0.0
      %515 = vmatpush1.msra.mxu0 0.0
      %516 = vmatprep.subr.mxu0 0.0
      %517 = vmatpush1.msra.mxu0 0.0
      %518 = vmatprep.subr.mxu0 0.0
      %519 = vmatpush1.msra.mxu0 0.0
      %520 = vmatprep.subr.mxu0 0.0
      %521 = vmatpush1.msra.mxu0 0.0
      %522 = vmatprep.subr.mxu0 0.0
      %523 = vmatpush1.msra.mxu0 %v484
      %524 = vmatprep.subr.mxu0 0.0
      %525 = vmatpush1.msra.mxu0 %v483
      %526 = vmatprep.subr.mxu0 0.0
      %527 = vmatpush2.msra.mxu0 0.0
      %528 = vmatprep.subr.mxu0 0.0
      %529 = vmatpush2.msra.mxu0 0.0
      %530 = vmatprep.subr.mxu0 0.0
      %531 = vmatpush2.msra.mxu0 0.0
      %532 = vmatprep.subr.mxu0 0.0
      %533 = vmatpush2.msra.mxu0 0.0
      %534 = vmatprep.subr.mxu0 0.0
      %535 = vmatpush2.msra.mxu0 0.0
      %536 = vmatprep.subr.mxu0 0.0
      %537 = vmatpush2.msra.mxu0 0.0
      %538 = vmatprep.subr.mxu0 0.0
      %539 = vmatpush2.msra.mxu0 0.0
      %540 = vmatprep.subr.mxu0 0.0
      %541 = vmatpush2.msra.mxu0 0.0
      %542 = vmatprep.subr.mxu0 0.0
      %543 = vmatpush2.msra.mxu0 0.0
      %544 = vmatprep.subr.mxu0 0.0
      %545 = vmatpush2.msra.mxu0 0.0
      %546 = vmatprep.subr.mxu0 0.0
      %547 = vmatpush2.msra.mxu0 0.0
      %548 = vmatprep.subr.mxu0 0.0
      %549 = vmatpush2.msra.mxu0 0.0
      %550 = vmatprep.subr.mxu0 0.0
      %551 = vmatpush2.msra.mxu0 0.0
      %552 = vmatprep.subr.mxu0 0.0
      %553 = vmatpush2.msra.mxu0 0.0
      %554 = vmatprep.subr.mxu0 0.0
      %555 = vmatpush2.msra.mxu0 0.0
      %556 = vmatprep.subr.mxu0 0.0
      %557 = vmatpush2.msra.mxu0 0.0
      %558 = vmatprep.mubr.f32.mxu0 0.0
      %559 = vmatmul.mubr.f32.gmra.mxu0 %v489
      %v560 = vpop.f32.mrf.mxu0
      %v561 = vadd.f32 0.0, %v560
      %v562 = vpop.f32.mrf.mxu0
      %563 = vmatprep.mubr.f32.mxu0 0.0
      %564 = vmatmul.mubr.f32.gmra.mxu0 %v492
      %v565 = vpop.f32.mrf.mxu0
      %v566 = vadd.f32 0.0, %v565
      %v567 = vpop.f32.mrf.mxu0
      %568 = vdwg.mxu0
      %v569 = vld [vmem:[%s7] sm:$0xff]
      %v570 = vld [vmem:[%s7 + $0x8] sm:$0xff]
      %v571 = vld [vmem:[%s7 + $0x10] sm:$0xff]
      %v573 = vsel %vm487, %v569, 0
      %v576 = vsel %vm487, %v570, 0
      %v579 = vsel %vm487, %v571, 0
      %581 = vmatprep.subr.mxu0 0.0
      %582 = vmatpush1.msra.mxu0 0.0
      %583 = vmatprep.subr.mxu0 0.0
      %584 = vmatpush1.msra.mxu0 0.0
      %585 = vmatprep.subr.mxu0 0.0
      %586 = vmatpush1.msra.mxu0 0.0
      %587 = vmatprep.subr.mxu0 0.0
      %588 = vmatpush1.msra.mxu0 0.0
      %589 = vmatprep.subr.mxu0 0.0
      %590 = vmatpush1.msra.mxu0 0.0
      %591 = vmatprep.subr.mxu0 0.0
      %592 = vmatpush1.msra.mxu0 0.0
      %593 = vmatprep.subr.mxu0 0.0
      %594 = vmatpush1.msra.mxu0 0.0
      %595 = vmatprep.subr.mxu0 0.0
      %596 = vmatpush1.msra.mxu0 0.0
      %597 = vmatprep.subr.mxu0 0.0
      %598 = vmatpush1.msra.mxu0 0.0
      %599 = vmatprep.subr.mxu0 0.0
      %600 = vmatpush1.msra.mxu0 0.0
      %601 = vmatprep.subr.mxu0 0.0
      %602 = vmatpush1.msra.mxu0 0.0
      %603 = vmatprep.subr.mxu0 0.0
      %604 = vmatpush1.msra.mxu0 0.0
      %605 = vmatprep.subr.mxu0 0.0
      %606 = vmatpush1.msra.mxu0 0.0
      %607 = vmatprep.subr.mxu0 0.0
      %608 = vmatpush1.msra.mxu0 0.0
      %609 = vmatprep.subr.mxu0 0.0
      %610 = vmatpush1.msra.mxu0 %v566
      %611 = vmatprep.subr.mxu0 0.0
      %612 = vmatpush1.msra.mxu0 %v561
      %613 = vmatprep.subr.mxu0 0.0
      %614 = vmatpush2.msra.mxu0 0.0
      %615 = vmatprep.subr.mxu0 0.0
      %616 = vmatpush2.msra.mxu0 0.0
      %617 = vmatprep.subr.mxu0 0.0
      %618 = vmatpush2.msra.mxu0 0.0
      %619 = vmatprep.subr.mxu0 0.0
      %620 = vmatpush2.msra.mxu0 0.0
      %621 = vmatprep.subr.mxu0 0.0
      %622 = vmatpush2.msra.mxu0 0.0
      %623 = vmatprep.subr.mxu0 0.0
      %624 = vmatpush2.msra.mxu0 0.0
      %625 = vmatprep.subr.mxu0 0.0
      %626 = vmatpush2.msra.mxu0 0.0
      %627 = vmatprep.subr.mxu0 0.0
      %628 = vmatpush2.msra.mxu0 0.0
      %629 = vmatprep.subr.mxu0 0.0
      %630 = vmatpush2.msra.mxu0 0.0
      %631 = vmatprep.subr.mxu0 0.0
      %632 = vmatpush2.msra.mxu0 0.0
      %633 = vmatprep.subr.mxu0 0.0
      %634 = vmatpush2.msra.mxu0 0.0
      %635 = vmatprep.subr.mxu0 0.0
      %636 = vmatpush2.msra.mxu0 0.0
      %637 = vmatprep.subr.mxu0 0.0
      %638 = vmatpush2.msra.mxu0 0.0
      %639 = vmatprep.subr.mxu0 0.0
      %640 = vmatpush2.msra.mxu0 0.0
      %641 = vmatprep.subr.mxu0 0.0
      %642 = vmatpush2.msra.mxu0 0.0
      %643 = vmatprep.subr.mxu0 0.0
      %644 = vmatpush2.msra.mxu0 0.0
      %645 = vmatprep.mubr.f32.mxu0 0.0
      %646 = vmatmul.mubr.f32.gmra.mxu0 %v573
      %v647 = vpop.f32.mrf.mxu0
      %v648 = vadd.f32 0.0, %v647
      %v649 = vpop.f32.mrf.mxu0
      %650 = vmatprep.mubr.f32.mxu0 0.0
      %651 = vmatmul.mubr.f32.gmra.mxu0 %v576
      %v652 = vpop.f32.mrf.mxu0
      %v653 = vadd.f32 0.0, %v652
      %v654 = vpop.f32.mrf.mxu0
      %655 = vmatprep.mubr.f32.mxu0 0.0
      %656 = vmatmul.mubr.f32.gmra.mxu0 %v579
      %v657 = vpop.f32.mrf.mxu0
      %v658 = vadd.f32 0.0, %v657
      %v659 = vpop.f32.mrf.mxu0
      %660 = vdwg.mxu0
      %v661 = vsub.f32 %v648, %v483
      %v662 = vsub.f32 %v653, %v484
      %v663 = vmul.f32 %v561, %v661
      %v664 = vmul.f32 %v566, %v662
      %v665 = vadd.f32 %v663, %v664
      %v666 = vrot.slane %v665, 4
      %v667 = vadd.f32 %v665, %v666
      %v668 = vrot.slane %v667, 2
      %v669 = vadd.f32 %v667, %v668
      %v670 = vrot.slane %v669, 1
      %v671 = vadd.f32 %v669, %v670
      %v672 = vld [vmem:[%s404] sm:$0x1]
      %v673 = vsub.f32 %v672, %v658
      %v674 = vld [vmem:[#allocation2] sm:$0x1]
      %v675 = vld [vmem:[%s412] sm:$0x1]
      %v676 = vmul.f32 %v673, %v673
      %v677 = vadd.f32 %v676, %v671
      %v678 = vmul.f32 %v675, %v677
      %v679 = vadd.f32 %v674, %v678
      %680 = vst [vmem:[#allocation2] sm:$0x1] %v679
      // Predicated region
      $region57: #{tpu_custom_call.1} parent=51 // pred_check
        %p681 = pneg %p425
      $region58: #{tpu_custom_call.1} parent=51 // pred_check_branch
        %683 = sbr.rel (%p681) target = $region60
      $region59: #{tpu_custom_call.1} parent=51 // pred_region
        %v684 = vld [vmem:[#allocation2] sm:$0x1]
        %vm685 = vcmask 1040384
        %v686 = vsel %vm685, %v684, 0.0
        %687 = vadd.xlane.f32.xlu0 %v686
        %v688 = vpop.xlane.xlu0 %687
        %vm689 = vcmask 0
        %690 = vst.msk [vmem:[%s424] sm:$0x1] %vm689, %v688
      $region60: #{tpu_custom_call.1} parent=51 // pred_fallthru
        _
      %p691 = scmp.lt.s32.totalorder %s24, 1
      %s692 = scalar_select %p691, %s24, 1
      %p693 = scmp.lt.s32.totalorder %s25, 0
      %s694 = scalar_select %p693, %s25, 0
      %s695 = sadd.s32 %s694, %s692
      %s696 = scalar_lea.vmem %s8, %s695
      // Predicated region
      $region61: #{tpu_custom_call.1} parent=51 // pred_check
        %p697 = pneg %p258
      $region62: #{tpu_custom_call.1} parent=51 // pred_check_branch
        %699 = sbr.rel (%p697) target = $region64
      $region63: #{tpu_custom_call.1} parent=51 // pred_region
        _
      $region64: #{tpu_custom_call.1} parent=51 // pred_fallthru
        _
    $region52: #{tpu_custom_call.1} parent=5 // pred_fallthru
      _
    %p700 = scmp.le.s32.totalorder 2, %s14
    // Predicated region
    $region65: #{tpu_custom_call.1} parent=5 // pred_check
      %p701 = pneg %p700
    $region66: #{tpu_custom_call.1} parent=5 // pred_check_branch
      %703 = sbr.rel (%p701) target = $region68
    $region67: #{tpu_custom_call.1} parent=5 // pred_region
      %s704 = ssub.s32 %s14, 2
      // Predicated region
      $region69: #{tpu_custom_call.1} parent=67 // pred_check
        %p705 = pneg %p264
      $region70: #{tpu_custom_call.1} parent=67 // pred_check_branch
        %707 = sbr.rel (%p705) target = $region72
      $region71: #{tpu_custom_call.1} parent=67 // pred_region
        %p708 = scmp.lt.s32.totalorder %s27, 1
        %s709 = scalar_select %p708, %s27, 1
        %p710 = scmp.lt.s32.totalorder %s28, 0
        %s711 = scalar_select %p710, %s28, 0
        %s712 = sadd.s32 %s711, %s709
        %s713 = scalar_lea.vmem %s8, %s712
      $region72: #{tpu_custom_call.1} parent=67 // pred_fallthru
        _
    $region68: #{tpu_custom_call.1} parent=5 // pred_fallthru
      _
  $region6: #{tpu_custom_call.1} parent=0 // loop_footer
    %s18 = sadd.s32 1, %s14
  $region7: #{tpu_custom_call.1} parent=0 // loop_footer_branch
    %13 = sbr.rel target = $region3
  $region8: #{tpu_custom_call.1} parent=0 // loop_exit
    _

</llo_original>
